<compile_context>
chip_gen: v7x
topology: tpu7x:2x2x1
jax: 0.10.0
libtpu: 0.0.40
codegen_flags: <defaults>
</compile_context>

<pallas_src>
import math
from functools import partial

import jax
import jax.numpy as jnp
from jax import lax
from jax.experimental import pallas as pl
from jax.experimental.pallas import tpu as pltpu

# -------------------- config (matches GPTConfig in the prompt) --------------------
EMB_DIM = 3
VOCAB_SIZE = 64
CONTEXT_LENGTH = 4
ATTN_HEADS = 1                      # single head -> head_dim == EMB_DIM
N_LAYERS = 1
EPS = 1e-5
FF_HIDDEN = 4 * EMB_DIM
LANES = 128
INV_SQRT_HD = 1.0 / math.sqrt(EMB_DIM)

# -------------------- packed parameter slab layout (row offsets, 128 lanes/row) ----
def _build_layout():
    off, cur = {}, 0

    def add(name, rows):
        nonlocal cur
        off[name] = cur
        cur += rows

    add("pos", CONTEXT_LENGTH)          # (C, E)
    add("ln1_s", 1); add("ln1_b", 1)    # (E,)
    add("wq", EMB_DIM); add("wk", EMB_DIM); add("wv", EMB_DIM)   # (E, E) each, stored [in, out]
    add("wo", EMB_DIM); add("bo", 1)
    add("ln2_s", 1); add("ln2_b", 1)
    add("w1", EMB_DIM); add("b1", 1)    # (E, 4E), (4E,)
    add("w2", FF_HIDDEN); add("b2", 1)  # (4E, E), (E,)
    add("lnf_s", 1); add("lnf_b", 1)
    add("whead", EMB_DIM)               # (E, V) padded to (E, 128) -> lane-dense head matmul
    add("tok", VOCAB_SIZE)              # (V, E) token-embedding table, one row per id
    return off, cur


OFF, _USED_ROWS = _build_layout()
SLAB_ROWS = ((_USED_ROWS + 7) // 8) * 8     # pad row count to sublane multiple


# -------------------- in-kernel helpers (pure jnp, traced into the kernel) --------
def _layernorm(x, scale, shift):
    mean = jnp.mean(x, axis=-1, keepdims=True)
    var = jnp.mean((x - mean) ** 2, axis=-1, keepdims=True)   # unbiased=False
    return scale * ((x - mean) * lax.rsqrt(var + EPS)) + shift


def _gelu(x):
    # tanh-approximate GELU (Raschka GPT implementation); tanh -> EUP slot
    c = jnp.float32(math.sqrt(2.0 / math.pi))
    return 0.5 * x * (1.0 + jnp.tanh(c * (x + 0.044715 * x * x * x)))


# -------------------- the Pallas kernel: whole forward pass -----------------------
def gpt_forward_kernel(idx_ref, p_ref, out_ref, *, batch, seq):
    # idx_ref : (N,) int32 token ids in SMEM
    # p_ref   : (SLAB_ROWS, 128) f32 packed parameter slab in VMEM
    # out_ref : (N, 128) f32 lane-dense padded logits
    E, H, S, B = EMB_DIM, FF_HIDDEN, seq, batch
    N = B * S

    def rows(name, n, width=LANES):
        r0 = OFF[name]
        return p_ref[r0:r0 + n, :width]

    # ---- embedding: SMEM-indexed per-token row gather + fused positional add ----
    gathered = []
    for n in range(N):                                   # tiny static trip count -> unrolled
        tid = idx_ref[n]                                 # scalar token id from SMEM
        tok_row = p_ref[pl.ds(OFF["tok"] + tid, 1), :]   # dynamic row gather, (1, 128)
        p0 = OFF["pos"] + (n % S)
        pos_row = p_ref[p0:p0 + 1, :]                    # static positional row, (1, 128)
        gathered.append(tok_row + pos_row)
    x = jnp.concatenate(gathered, axis=0)[:, :E]         # (N, E); drop_emb = identity (eval)

    # ---------------- TransformerBlock (n_layers = 1) ----------------
    # attention sub-block — (B,S) collapsed to N for all projections (plain 2-D matmuls)
    shortcut = x
    h = _layernorm(x, rows("ln1_s", 1, E), rows("ln1_b", 1, E))
    q = jnp.dot(h, rows("wq", E, E), preferred_element_type=jnp.float32)
    k = jnp.dot(h, rows("wk", E, E), preferred_element_type=jnp.float32)
    v = jnp.dot(h, rows("wv", E, E), preferred_element_type=jnp.float32)

    q3 = q.reshape(B, S, E)
    k3 = k.reshape(B, S, E)
    v3 = v.reshape(B, S, E)

    # degenerate contractions (K=E=3 and K=S=4) stay on the VPU/XLU, not the MXU
    scores = jnp.sum(q3[:, :, None, :] * k3[:, None, :, :], axis=-1)     # (B, S, S)
    scores = scores * jnp.float32(INV_SQRT_HD)                           # precomputed 1/sqrt(hd)
    row_i = lax.broadcasted_iota(jnp.int32, (S, S), 0)
    col_i = lax.broadcasted_iota(jnp.int32, (S, S), 1)
    scores = jnp.where((col_i > row_i)[None, :, :], -jnp.inf, scores)    # causal mask
    scores = scores - jnp.max(scores, axis=-1, keepdims=True)
    pexp = jnp.exp(scores)
    attn = pexp * pl.reciprocal(jnp.sum(pexp, axis=-1, keepdims=True), approx=True)
    # attn dropout = identity (eval)
    ctx = jnp.sum(attn[:, :, :, None] * v3[:, None, :, :], axis=2)       # (B, S, E)
    ctx = ctx.reshape(N, E)

    attn_out = jnp.dot(ctx, rows("wo", E, E),
                       preferred_element_type=jnp.float32) + rows("bo", 1, E)
    x = shortcut + attn_out                              # shortcut dropout = identity (eval)

    # feed-forward sub-block
    shortcut = x
    h = _layernorm(x, rows("ln2_s", 1, E), rows("ln2_b", 1, E))
    ff = jnp.dot(h, rows("w1", E, H), preferred_element_type=jnp.float32) + rows("b1", 1, H)
    ff = _gelu(ff)
    ff = jnp.dot(ff, rows("w2", H, E), preferred_element_type=jnp.float32) + rows("b2", 1, E)
    x = shortcut + ff                                    # shortcut dropout = identity (eval)

    # ---------------- final norm + LM head (lane-dense 128-wide output store) -------
    x = _layernorm(x, rows("lnf_s", 1, E), rows("lnf_b", 1, E))
    out_ref[...] = jnp.dot(x, rows("whead", E, LANES),
                           preferred_element_type=jnp.float32)           # (N, 128)


# -------------------- host-side wrapper --------------------
def pack_params(params):
    """Pack all parameters into one lane-dense (SLAB_ROWS, 128) f32 slab."""
    def pad_lanes(mat):
        mat = jnp.asarray(mat, jnp.float32)
        if mat.ndim == 1:
            mat = mat[None, :]
        r, c = mat.shape
        return jnp.pad(mat, ((0, 0), (0, LANES - c)))

    entries = {
        "pos": params["pos_emb"],
        "ln1_s": params["ln1_s"], "ln1_b": params["ln1_b"],
        "wq": params["wq"], "wk": params["wk"], "wv": params["wv"],
        "wo": params["wo"], "bo": params["bo"],
        "ln2_s": params["ln2_s"], "ln2_b": params["ln2_b"],
        "w1": params["w1"], "b1": params["b1"],
        "w2": params["w2"], "b2": params["b2"],
        "lnf_s": params["lnf_s"], "lnf_b": params["lnf_b"],
        "whead": params["whead"],
        "tok": params["tok_emb"],
    }
    slab = jnp.zeros((SLAB_ROWS, LANES), jnp.float32)
    for name, mat in entries.items():
        slab = lax.dynamic_update_slice(slab, pad_lanes(mat), (OFF[name], 0))
    return slab


def gpt_forward(in_idx, slab):
    B, S = in_idx.shape
    N = B * S
    kernel = partial(gpt_forward_kernel, batch=B, seq=S)
    logits_pad = pl.pallas_call(
        kernel,
        out_shape=jax.ShapeDtypeStruct((N, LANES), jnp.float32),
        in_specs=[
            pl.BlockSpec(memory_space=pltpu.MemorySpace.SMEM),   # token ids (scalars)
            pl.BlockSpec(memory_space=pltpu.MemorySpace.VMEM),   # packed parameter slab
        ],
        out_specs=pl.BlockSpec(memory_space=pltpu.MemorySpace.VMEM),
    )(in_idx.reshape(N).astype(jnp.int32), slab)
    return logits_pad[:, :VOCAB_SIZE].reshape(B, S, VOCAB_SIZE)


def init_params(key):
    ks = jax.random.split(key, 9)
    std = 0.02
    f32 = jnp.float32
    return {
        "tok_emb": std * jax.random.normal(ks[0], (VOCAB_SIZE, EMB_DIM), f32),
        "pos_emb": std * jax.random.normal(ks[1], (CONTEXT_LENGTH, EMB_DIM), f32),
        # transformer block (layer 0) — Linear weights stored pre-transposed [in, out]
        "ln1_s": jnp.ones((EMB_DIM,), f32), "ln1_b": jnp.zeros((EMB_DIM,), f32),
        "wq": std * jax.random.normal(ks[2], (EMB_DIM, EMB_DIM), f32),   # qkv_bias=False
        "wk": std * jax.random.normal(ks[3], (EMB_DIM, EMB_DIM), f32),
        "wv": std * jax.random.normal(ks[4], (EMB_DIM, EMB_DIM), f32),
        "wo": std * jax.random.normal(ks[5], (EMB_DIM, EMB_DIM), f32),
        "bo": jnp.zeros((EMB_DIM,), f32),
        "ln2_s": jnp.ones((EMB_DIM,), f32), "ln2_b": jnp.zeros((EMB_DIM,), f32),
        "w1": std * jax.random.normal(ks[6], (EMB_DIM, FF_HIDDEN), f32),
        "b1": jnp.zeros((FF_HIDDEN,), f32),
        "w2": std * jax.random.normal(ks[7], (FF_HIDDEN, EMB_DIM), f32),
        "b2": jnp.zeros((EMB_DIM,), f32),
        # final norm + output head (bias=False)
        "lnf_s": jnp.ones((EMB_DIM,), f32), "lnf_b": jnp.zeros((EMB_DIM,), f32),
        "whead": std * jax.random.normal(ks[8], (EMB_DIM, VOCAB_SIZE), f32),
    }


if __name__ == "__main__":
    key = jax.random.PRNGKey(0)
    k_idx, k_params = jax.random.split(key)

    batch, seq = 2, CONTEXT_LENGTH                       # in_idx: (2, 4) int32 token ids
    in_idx = jax.random.randint(k_idx, (batch, seq), 0, VOCAB_SIZE, dtype=jnp.int32)
    params = init_params(k_params)
    slab = pack_params(params)

    logits = gpt_forward(in_idx, slab)
    logits = jax.block_until_ready(logits)

    assert logits.shape == (batch, seq, VOCAB_SIZE)
    assert bool(jnp.all(jnp.isfinite(logits)))
    print("KERNEL_OK")
</pallas_src>

<mosaic_0001>
module attributes {stable_mosaic.version = 11 : i64} {
  func.func @gpt_forward_kernel(%arg0: memref<8xi32, #tpu.memory_space<smem>>, %arg1: memref<112x128xf32, #tpu.memory_space<vmem>>, %arg2: memref<8x128xf32, #tpu.memory_space<vmem>>) attributes {dimension_semantics = [], scalar_prefetch = 0 : i64, scratch_operands = 0 : i64, tpu.core_type = #tpu.core_type<tc>} {
    %c0 = arith.constant 0 : index
    %0 = memref.load %arg0[%c0] : memref<8xi32, #tpu.memory_space<smem>>
    %c43_i32 = arith.constant 43 : i32
    %1 = arith.addi %c43_i32, %0 : i32
    %2 = arith.index_cast %1 : i32 to index
    %c0_0 = arith.constant 0 : index
    %3 = vector.load %arg1[%2, %c0_0] : memref<112x128xf32, #tpu.memory_space<vmem>>, vector<1x128xf32>
    %c0_1 = arith.constant 0 : index
    %c0_2 = arith.constant 0 : index
    %4 = vector.load %arg1[%c0_1, %c0_2] : memref<112x128xf32, #tpu.memory_space<vmem>>, vector<1x128xf32>
    %5 = arith.addf %3, %4 : vector<1x128xf32>
    %c1 = arith.constant 1 : index
    %6 = memref.load %arg0[%c1] : memref<8xi32, #tpu.memory_space<smem>>
    %c43_i32_3 = arith.constant 43 : i32
    %7 = arith.addi %c43_i32_3, %6 : i32
    %8 = arith.index_cast %7 : i32 to index
    %c0_4 = arith.constant 0 : index
    %9 = vector.load %arg1[%8, %c0_4] : memref<112x128xf32, #tpu.memory_space<vmem>>, vector<1x128xf32>
    %c1_5 = arith.constant 1 : index
    %c0_6 = arith.constant 0 : index
    %10 = vector.load %arg1[%c1_5, %c0_6] : memref<112x128xf32, #tpu.memory_space<vmem>>, vector<1x128xf32>
    %11 = arith.addf %9, %10 : vector<1x128xf32>
    %c2 = arith.constant 2 : index
    %12 = memref.load %arg0[%c2] : memref<8xi32, #tpu.memory_space<smem>>
    %c43_i32_7 = arith.constant 43 : i32
    %13 = arith.addi %c43_i32_7, %12 : i32
    %14 = arith.index_cast %13 : i32 to index
    %c0_8 = arith.constant 0 : index
    %15 = vector.load %arg1[%14, %c0_8] : memref<112x128xf32, #tpu.memory_space<vmem>>, vector<1x128xf32>
    %c2_9 = arith.constant 2 : index
    %c0_10 = arith.constant 0 : index
    %16 = vector.load %arg1[%c2_9, %c0_10] : memref<112x128xf32, #tpu.memory_space<vmem>>, vector<1x128xf32>
    %17 = arith.addf %15, %16 : vector<1x128xf32>
    %c3 = arith.constant 3 : index
    %18 = memref.load %arg0[%c3] : memref<8xi32, #tpu.memory_space<smem>>
    %c43_i32_11 = arith.constant 43 : i32
    %19 = arith.addi %c43_i32_11, %18 : i32
    %20 = arith.index_cast %19 : i32 to index
    %c0_12 = arith.constant 0 : index
    %21 = vector.load %arg1[%20, %c0_12] : memref<112x128xf32, #tpu.memory_space<vmem>>, vector<1x128xf32>
    %c3_13 = arith.constant 3 : index
    %c0_14 = arith.constant 0 : index
    %22 = vector.load %arg1[%c3_13, %c0_14] : memref<112x128xf32, #tpu.memory_space<vmem>>, vector<1x128xf32>
    %23 = arith.addf %21, %22 : vector<1x128xf32>
    %c4 = arith.constant 4 : index
    %24 = memref.load %arg0[%c4] : memref<8xi32, #tpu.memory_space<smem>>
    %c43_i32_15 = arith.constant 43 : i32
    %25 = arith.addi %c43_i32_15, %24 : i32
    %26 = arith.index_cast %25 : i32 to index
    %c0_16 = arith.constant 0 : index
    %27 = vector.load %arg1[%26, %c0_16] : memref<112x128xf32, #tpu.memory_space<vmem>>, vector<1x128xf32>
    %c0_17 = arith.constant 0 : index
    %c0_18 = arith.constant 0 : index
    %28 = vector.load %arg1[%c0_17, %c0_18] : memref<112x128xf32, #tpu.memory_space<vmem>>, vector<1x128xf32>
    %29 = arith.addf %27, %28 : vector<1x128xf32>
    %c5 = arith.constant 5 : index
    %30 = memref.load %arg0[%c5] : memref<8xi32, #tpu.memory_space<smem>>
    %c43_i32_19 = arith.constant 43 : i32
    %31 = arith.addi %c43_i32_19, %30 : i32
    %32 = arith.index_cast %31 : i32 to index
    %c0_20 = arith.constant 0 : index
    %33 = vector.load %arg1[%32, %c0_20] : memref<112x128xf32, #tpu.memory_space<vmem>>, vector<1x128xf32>
    %c1_21 = arith.constant 1 : index
    %c0_22 = arith.constant 0 : index
    %34 = vector.load %arg1[%c1_21, %c0_22] : memref<112x128xf32, #tpu.memory_space<vmem>>, vector<1x128xf32>
    %35 = arith.addf %33, %34 : vector<1x128xf32>
    %c6 = arith.constant 6 : index
    %36 = memref.load %arg0[%c6] : memref<8xi32, #tpu.memory_space<smem>>
    %c43_i32_23 = arith.constant 43 : i32
    %37 = arith.addi %c43_i32_23, %36 : i32
    %38 = arith.index_cast %37 : i32 to index
    %c0_24 = arith.constant 0 : index
    %39 = vector.load %arg1[%38, %c0_24] : memref<112x128xf32, #tpu.memory_space<vmem>>, vector<1x128xf32>
    %c2_25 = arith.constant 2 : index
    %c0_26 = arith.constant 0 : index
    %40 = vector.load %arg1[%c2_25, %c0_26] : memref<112x128xf32, #tpu.memory_space<vmem>>, vector<1x128xf32>
    %41 = arith.addf %39, %40 : vector<1x128xf32>
    %c7 = arith.constant 7 : index
    %42 = memref.load %arg0[%c7] : memref<8xi32, #tpu.memory_space<smem>>
    %c43_i32_27 = arith.constant 43 : i32
    %43 = arith.addi %c43_i32_27, %42 : i32
    %44 = arith.index_cast %43 : i32 to index
    %c0_28 = arith.constant 0 : index
    %45 = vector.load %arg1[%44, %c0_28] : memref<112x128xf32, #tpu.memory_space<vmem>>, vector<1x128xf32>
    %c3_29 = arith.constant 3 : index
    %c0_30 = arith.constant 0 : index
    %46 = vector.load %arg1[%c3_29, %c0_30] : memref<112x128xf32, #tpu.memory_space<vmem>>, vector<1x128xf32>
    %47 = arith.addf %45, %46 : vector<1x128xf32>
    %48 = tpu.concatenate %5, %11, %17, %23, %29, %35, %41, %47 in 0 : vector<1x128xf32>, vector<1x128xf32>, vector<1x128xf32>, vector<1x128xf32>, vector<1x128xf32>, vector<1x128xf32>, vector<1x128xf32>, vector<1x128xf32> -> vector<8x128xf32>
    %49 = vector.extract_strided_slice %48 {offsets = [0, 0], sizes = [8, 3], strides = [1, 1]} : vector<8x128xf32> to vector<8x3xf32>
    %c4_31 = arith.constant 4 : index
    %c0_32 = arith.constant 0 : index
    %50 = vector.load %arg1[%c4_31, %c0_32] : memref<112x128xf32, #tpu.memory_space<vmem>>, vector<1x3xf32>
    %c5_33 = arith.constant 5 : index
    %c0_34 = arith.constant 0 : index
    %51 = vector.load %arg1[%c5_33, %c0_34] : memref<112x128xf32, #tpu.memory_space<vmem>>, vector<1x3xf32>
    %cst = arith.constant dense<0.000000e+00> : vector<8xf32>
    %52 = vector.multi_reduction <add>, %49, %cst [1] : vector<8x3xf32> to vector<8xf32>
    %53 = vector.shape_cast %52 : vector<8xf32> to vector<8x1xf32>
    %cst_35 = arith.constant 3.000000e+00 : f32
    %54 = vector.broadcast %cst_35 : f32 to vector<8x1xf32>
    %55 = arith.divf %53, %54 : vector<8x1xf32>
    %56 = vector.broadcast %55 : vector<8x1xf32> to vector<8x3xf32>
    %57 = arith.subf %49, %56 : vector<8x3xf32>
    %58 = arith.mulf %57, %57 : vector<8x3xf32>
    %cst_36 = arith.constant dense<0.000000e+00> : vector<8xf32>
    %59 = vector.multi_reduction <add>, %58, %cst_36 [1] : vector<8x3xf32> to vector<8xf32>
    %60 = vector.shape_cast %59 : vector<8xf32> to vector<8x1xf32>
    %cst_37 = arith.constant 3.000000e+00 : f32
    %61 = vector.broadcast %cst_37 : f32 to vector<8x1xf32>
    %62 = arith.divf %60, %61 : vector<8x1xf32>
    %63 = vector.broadcast %55 : vector<8x1xf32> to vector<8x3xf32>
    %64 = arith.subf %49, %63 : vector<8x3xf32>
    %cst_38 = arith.constant 9.99999974E-6 : f32
    %65 = vector.broadcast %cst_38 : f32 to vector<8x1xf32>
    %66 = arith.addf %62, %65 : vector<8x1xf32>
    %67 = math.rsqrt %66 : vector<8x1xf32>
    %68 = vector.broadcast %67 : vector<8x1xf32> to vector<8x3xf32>
    %69 = arith.mulf %64, %68 : vector<8x3xf32>
    %70 = vector.broadcast %50 : vector<1x3xf32> to vector<8x3xf32>
    %71 = arith.mulf %70, %69 : vector<8x3xf32>
    %72 = vector.broadcast %51 : vector<1x3xf32> to vector<8x3xf32>
    %73 = arith.addf %71, %72 : vector<8x3xf32>
    %c6_39 = arith.constant 6 : index
    %c0_40 = arith.constant 0 : index
    %74 = vector.load %arg1[%c6_39, %c0_40] : memref<112x128xf32, #tpu.memory_space<vmem>>, vector<3x3xf32>
    %cst_41 = arith.constant dense<0.000000e+00> : vector<8x3xf32>
    %75 = tpu.matmul %73, %74, %cst_41 {dimension_numbers = #tpu.dot_dimension_numbers<[1], [0], [0], [1], [0, 0, 1, 1], [], []>} : vector<8x3xf32>, vector<3x3xf32>, vector<8x3xf32> -> vector<8x3xf32>
    %c9 = arith.constant 9 : index
    %c0_42 = arith.constant 0 : index
    %76 = vector.load %arg1[%c9, %c0_42] : memref<112x128xf32, #tpu.memory_space<vmem>>, vector<3x3xf32>
    %cst_43 = arith.constant dense<0.000000e+00> : vector<8x3xf32>
    %77 = tpu.matmul %73, %76, %cst_43 {dimension_numbers = #tpu.dot_dimension_numbers<[1], [0], [0], [1], [0, 0, 1, 1], [], []>} : vector<8x3xf32>, vector<3x3xf32>, vector<8x3xf32> -> vector<8x3xf32>
    %c12 = arith.constant 12 : index
    %c0_44 = arith.constant 0 : index
    %78 = vector.load %arg1[%c12, %c0_44] : memref<112x128xf32, #tpu.memory_space<vmem>>, vector<3x3xf32>
    %cst_45 = arith.constant dense<0.000000e+00> : vector<8x3xf32>
    %79 = tpu.matmul %73, %78, %cst_45 {dimension_numbers = #tpu.dot_dimension_numbers<[1], [0], [0], [1], [0, 0, 1, 1], [], []>} : vector<8x3xf32>, vector<3x3xf32>, vector<8x3xf32> -> vector<8x3xf32>
    %80 = vector.shape_cast %75 : vector<8x3xf32> to vector<2x4x3xf32>
    %81 = vector.shape_cast %77 : vector<8x3xf32> to vector<2x4x3xf32>
    %82 = vector.shape_cast %79 : vector<8x3xf32> to vector<2x4x3xf32>
    %83 = vector.shape_cast %80 : vector<2x4x3xf32> to vector<2x4x1x3xf32>
    %84 = vector.shape_cast %81 : vector<2x4x3xf32> to vector<2x1x4x3xf32>
    %85 = vector.broadcast %83 : vector<2x4x1x3xf32> to vector<2x4x4x3xf32>
    %86 = vector.broadcast %84 : vector<2x1x4x3xf32> to vector<2x4x4x3xf32>
    %87 = arith.mulf %85, %86 : vector<2x4x4x3xf32>
    %cst_46 = arith.constant dense<0.000000e+00> : vector<2x4x4xf32>
    %88 = vector.multi_reduction <add>, %87, %cst_46 [3] : vector<2x4x4x3xf32> to vector<2x4x4xf32>
    %cst_47 = arith.constant 0.577350259 : f32
    %89 = vector.broadcast %cst_47 : f32 to vector<2x4x4xf32>
    %90 = arith.mulf %88, %89 : vector<2x4x4xf32>
    %91 = tpu.iota {dimensions = array<i32: 0>} : vector<4x4xi32>
    %92 = tpu.iota {dimensions = array<i32: 1>} : vector<4x4xi32>
    %93 = arith.cmpi sgt, %92, %91 : vector<4x4xi32>
    %94 = vector.shape_cast %93 : vector<4x4xi1> to vector<1x4x4xi1>
    %cst_48 = arith.constant 0xFF800000 : f32
    %95 = vector.shape_cast %94 : vector<1x4x4xi1> to vector<1x4x4xi1>
    %96 = vector.broadcast %95 : vector<1x4x4xi1> to vector<2x4x4xi1>
    %97 = vector.broadcast %cst_48 : f32 to vector<2x4x4xf32>
    %98 = arith.select %96, %97, %90 : vector<2x4x4xi1>, vector<2x4x4xf32>
    %cst_49 = arith.constant dense<0xFF800000> : vector<2x4xf32>
    %99 = vector.multi_reduction <maximumf>, %98, %cst_49 [2] : vector<2x4x4xf32> to vector<2x4xf32>
    %100 = vector.shape_cast %99 : vector<2x4xf32> to vector<2x4x1xf32>
    %101 = vector.broadcast %100 : vector<2x4x1xf32> to vector<2x4x4xf32>
    %102 = arith.subf %98, %101 : vector<2x4x4xf32>
    %103 = math.exp %102 : vector<2x4x4xf32>
    %cst_50 = arith.constant dense<0.000000e+00> : vector<2x4xf32>
    %104 = vector.multi_reduction <add>, %103, %cst_50 [2] : vector<2x4x4xf32> to vector<2x4xf32>
    %105 = vector.shape_cast %104 : vector<2x4xf32> to vector<2x4x1xf32>
    %106 = tpu.reciprocal %105 {approx = true} : vector<2x4x1xf32> -> vector<2x4x1xf32>
    %107 = vector.broadcast %106 : vector<2x4x1xf32> to vector<2x4x4xf32>
    %108 = arith.mulf %103, %107 : vector<2x4x4xf32>
    %109 = vector.shape_cast %108 : vector<2x4x4xf32> to vector<2x4x4x1xf32>
    %110 = vector.shape_cast %82 : vector<2x4x3xf32> to vector<2x1x4x3xf32>
    %111 = vector.broadcast %109 : vector<2x4x4x1xf32> to vector<2x4x4x3xf32>
    %112 = vector.broadcast %110 : vector<2x1x4x3xf32> to vector<2x4x4x3xf32>
    %113 = arith.mulf %111, %112 : vector<2x4x4x3xf32>
    %cst_51 = arith.constant dense<0.000000e+00> : vector<2x4x3xf32>
    %114 = vector.multi_reduction <add>, %113, %cst_51 [2] : vector<2x4x4x3xf32> to vector<2x4x3xf32>
    %115 = vector.shape_cast %114 : vector<2x4x3xf32> to vector<8x3xf32>
    %c15 = arith.constant 15 : index
    %c0_52 = arith.constant 0 : index
    %116 = vector.load %arg1[%c15, %c0_52] : memref<112x128xf32, #tpu.memory_space<vmem>>, vector<3x3xf32>
    %cst_53 = arith.constant dense<0.000000e+00> : vector<8x3xf32>
    %117 = tpu.matmul %115, %116, %cst_53 {dimension_numbers = #tpu.dot_dimension_numbers<[1], [0], [0], [1], [0, 0, 1, 1], [], []>} : vector<8x3xf32>, vector<3x3xf32>, vector<8x3xf32> -> vector<8x3xf32>
    %c18 = arith.constant 18 : index
    %c0_54 = arith.constant 0 : index
    %118 = vector.load %arg1[%c18, %c0_54] : memref<112x128xf32, #tpu.memory_space<vmem>>, vector<1x3xf32>
    %119 = vector.broadcast %118 : vector<1x3xf32> to vector<8x3xf32>
    %120 = arith.addf %117, %119 : vector<8x3xf32>
    %121 = arith.addf %49, %120 : vector<8x3xf32>
    %c19 = arith.constant 19 : index
    %c0_55 = arith.constant 0 : index
    %122 = vector.load %arg1[%c19, %c0_55] : memref<112x128xf32, #tpu.memory_space<vmem>>, vector<1x3xf32>
    %c20 = arith.constant 20 : index
    %c0_56 = arith.constant 0 : index
    %123 = vector.load %arg1[%c20, %c0_56] : memref<112x128xf32, #tpu.memory_space<vmem>>, vector<1x3xf32>
    %cst_57 = arith.constant dense<0.000000e+00> : vector<8xf32>
    %124 = vector.multi_reduction <add>, %121, %cst_57 [1] : vector<8x3xf32> to vector<8xf32>
    %125 = vector.shape_cast %124 : vector<8xf32> to vector<8x1xf32>
    %cst_58 = arith.constant 3.000000e+00 : f32
    %126 = vector.broadcast %cst_58 : f32 to vector<8x1xf32>
    %127 = arith.divf %125, %126 : vector<8x1xf32>
    %128 = vector.broadcast %127 : vector<8x1xf32> to vector<8x3xf32>
    %129 = arith.subf %121, %128 : vector<8x3xf32>
    %130 = arith.mulf %129, %129 : vector<8x3xf32>
    %cst_59 = arith.constant dense<0.000000e+00> : vector<8xf32>
    %131 = vector.multi_reduction <add>, %130, %cst_59 [1] : vector<8x3xf32> to vector<8xf32>
    %132 = vector.shape_cast %131 : vector<8xf32> to vector<8x1xf32>
    %cst_60 = arith.constant 3.000000e+00 : f32
    %133 = vector.broadcast %cst_60 : f32 to vector<8x1xf32>
    %134 = arith.divf %132, %133 : vector<8x1xf32>
    %135 = vector.broadcast %127 : vector<8x1xf32> to vector<8x3xf32>
    %136 = arith.subf %121, %135 : vector<8x3xf32>
    %cst_61 = arith.constant 9.99999974E-6 : f32
    %137 = vector.broadcast %cst_61 : f32 to vector<8x1xf32>
    %138 = arith.addf %134, %137 : vector<8x1xf32>
    %139 = math.rsqrt %138 : vector<8x1xf32>
    %140 = vector.broadcast %139 : vector<8x1xf32> to vector<8x3xf32>
    %141 = arith.mulf %136, %140 : vector<8x3xf32>
    %142 = vector.broadcast %122 : vector<1x3xf32> to vector<8x3xf32>
    %143 = arith.mulf %142, %141 : vector<8x3xf32>
    %144 = vector.broadcast %123 : vector<1x3xf32> to vector<8x3xf32>
    %145 = arith.addf %143, %144 : vector<8x3xf32>
    %c21 = arith.constant 21 : index
    %c0_62 = arith.constant 0 : index
    %146 = vector.load %arg1[%c21, %c0_62] : memref<112x128xf32, #tpu.memory_space<vmem>>, vector<3x12xf32>
    %cst_63 = arith.constant dense<0.000000e+00> : vector<8x12xf32>
    %147 = tpu.matmul %145, %146, %cst_63 {dimension_numbers = #tpu.dot_dimension_numbers<[1], [0], [0], [1], [0, 0, 1, 1], [], []>} : vector<8x3xf32>, vector<3x12xf32>, vector<8x12xf32> -> vector<8x12xf32>
    %c24 = arith.constant 24 : index
    %c0_64 = arith.constant 0 : index
    %148 = vector.load %arg1[%c24, %c0_64] : memref<112x128xf32, #tpu.memory_space<vmem>>, vector<1x12xf32>
    %149 = vector.broadcast %148 : vector<1x12xf32> to vector<8x12xf32>
    %150 = arith.addf %147, %149 : vector<8x12xf32>
    %cst_65 = arith.constant 5.000000e-01 : f32
    %151 = vector.broadcast %cst_65 : f32 to vector<8x12xf32>
    %152 = arith.mulf %151, %150 : vector<8x12xf32>
    %cst_66 = arith.constant 4.471500e-02 : f32
    %153 = vector.broadcast %cst_66 : f32 to vector<8x12xf32>
    %154 = arith.mulf %153, %150 : vector<8x12xf32>
    %155 = arith.mulf %154, %150 : vector<8x12xf32>
    %156 = arith.mulf %155, %150 : vector<8x12xf32>
    %157 = arith.addf %150, %156 : vector<8x12xf32>
    %cst_67 = arith.constant 0.797884583 : f32
    %158 = vector.broadcast %cst_67 : f32 to vector<8x12xf32>
    %159 = arith.mulf %158, %157 : vector<8x12xf32>
    %160 = math.tanh %159 : vector<8x12xf32>
    %cst_68 = arith.constant 1.000000e+00 : f32
    %161 = vector.broadcast %cst_68 : f32 to vector<8x12xf32>
    %162 = arith.addf %161, %160 : vector<8x12xf32>
    %163 = arith.mulf %152, %162 : vector<8x12xf32>
    %c25 = arith.constant 25 : index
    %c0_69 = arith.constant 0 : index
    %164 = vector.load %arg1[%c25, %c0_69] : memref<112x128xf32, #tpu.memory_space<vmem>>, vector<12x3xf32>
    %cst_70 = arith.constant dense<0.000000e+00> : vector<8x3xf32>
    %165 = tpu.matmul %163, %164, %cst_70 {dimension_numbers = #tpu.dot_dimension_numbers<[1], [0], [0], [1], [0, 0, 1, 1], [], []>} : vector<8x12xf32>, vector<12x3xf32>, vector<8x3xf32> -> vector<8x3xf32>
    %c37 = arith.constant 37 : index
    %c0_71 = arith.constant 0 : index
    %166 = vector.load %arg1[%c37, %c0_71] : memref<112x128xf32, #tpu.memory_space<vmem>>, vector<1x3xf32>
    %167 = vector.broadcast %166 : vector<1x3xf32> to vector<8x3xf32>
    %168 = arith.addf %165, %167 : vector<8x3xf32>
    %169 = arith.addf %121, %168 : vector<8x3xf32>
    %c38 = arith.constant 38 : index
    %c0_72 = arith.constant 0 : index
    %170 = vector.load %arg1[%c38, %c0_72] : memref<112x128xf32, #tpu.memory_space<vmem>>, vector<1x3xf32>
    %c39 = arith.constant 39 : index
    %c0_73 = arith.constant 0 : index
    %171 = vector.load %arg1[%c39, %c0_73] : memref<112x128xf32, #tpu.memory_space<vmem>>, vector<1x3xf32>
    %cst_74 = arith.constant dense<0.000000e+00> : vector<8xf32>
    %172 = vector.multi_reduction <add>, %169, %cst_74 [1] : vector<8x3xf32> to vector<8xf32>
    %173 = vector.shape_cast %172 : vector<8xf32> to vector<8x1xf32>
    %cst_75 = arith.constant 3.000000e+00 : f32
    %174 = vector.broadcast %cst_75 : f32 to vector<8x1xf32>
    %175 = arith.divf %173, %174 : vector<8x1xf32>
    %176 = vector.broadcast %175 : vector<8x1xf32> to vector<8x3xf32>
    %177 = arith.subf %169, %176 : vector<8x3xf32>
    %178 = arith.mulf %177, %177 : vector<8x3xf32>
    %cst_76 = arith.constant dense<0.000000e+00> : vector<8xf32>
    %179 = vector.multi_reduction <add>, %178, %cst_76 [1] : vector<8x3xf32> to vector<8xf32>
    %180 = vector.shape_cast %179 : vector<8xf32> to vector<8x1xf32>
    %cst_77 = arith.constant 3.000000e+00 : f32
    %181 = vector.broadcast %cst_77 : f32 to vector<8x1xf32>
    %182 = arith.divf %180, %181 : vector<8x1xf32>
    %183 = vector.broadcast %175 : vector<8x1xf32> to vector<8x3xf32>
    %184 = arith.subf %169, %183 : vector<8x3xf32>
    %cst_78 = arith.constant 9.99999974E-6 : f32
    %185 = vector.broadcast %cst_78 : f32 to vector<8x1xf32>
    %186 = arith.addf %182, %185 : vector<8x1xf32>
    %187 = math.rsqrt %186 : vector<8x1xf32>
    %188 = vector.broadcast %187 : vector<8x1xf32> to vector<8x3xf32>
    %189 = arith.mulf %184, %188 : vector<8x3xf32>
    %190 = vector.broadcast %170 : vector<1x3xf32> to vector<8x3xf32>
    %191 = arith.mulf %190, %189 : vector<8x3xf32>
    %192 = vector.broadcast %171 : vector<1x3xf32> to vector<8x3xf32>
    %193 = arith.addf %191, %192 : vector<8x3xf32>
    %c40 = arith.constant 40 : index
    %c0_79 = arith.constant 0 : index
    %194 = vector.load %arg1[%c40, %c0_79] : memref<112x128xf32, #tpu.memory_space<vmem>>, vector<3x128xf32>
    %cst_80 = arith.constant dense<0.000000e+00> : vector<8x128xf32>
    %195 = tpu.matmul %193, %194, %cst_80 {dimension_numbers = #tpu.dot_dimension_numbers<[1], [0], [0], [1], [0, 0, 1, 1], [], []>} : vector<8x3xf32>, vector<3x128xf32>, vector<8x128xf32> -> vector<8x128xf32>
    %c0_81 = arith.constant 0 : index
    %c0_82 = arith.constant 0 : index
    %196 = vector.load %arg2[%c0_81, %c0_82] : memref<8x128xf32, #tpu.memory_space<vmem>>, vector<8x128xf32>
    tpu.vector_store %arg2[%c0_81, %c0_82], %195 {strides = array<i32>} : memref<8x128xf32, #tpu.memory_space<vmem>>, vector<8x128xf32>,
    return
  }
}

</mosaic_0001>

<llo_original>
// kernel: tpu_custom_call.1
$region0: #{tpu_custom_call.1}
  #allocation0 [shape = 'u32[]', space=smem, size = 0x4, offset = 0x4, fixed_abs, tag = 'smem constant byte address 0x4 - core index']
  #allocation1 [shape = 'u32[144,128]{1,0:T(1,128)}', space=vmem, size = 0x12000, scoped, tag = 'internal scratch']
  %s0 = inlined_call_operand.hbm [shape: s32[8], index: 0, kind: input, shape index: {}]
  %s1 = inlined_call_operand.hbm [shape: f32[112,128], index: 1, kind: input, shape index: {}]
  %s2 = inlined_call_operand.hbm [shape: f32[8,128], index: 2, kind: output, shape index: {}]
  %s3 = sld [smem:[#allocation0]]
  $region26: #{tpu_custom_call.1} parent=0
    _
  %s5 = ssub.s32 1, %s3
  %s6 = scalar_select 0, %s5, %s3
  $region1: #{tpu_custom_call.1} parent=0
    #allocation2 [shape = 'u8[512]{0}', space=smem, size = 0x200, scoped, tag = 'input window, operand 0, single buffered']
    #allocation3 [shape = 's32[1]{0}', space=sflag, size = 0x4, scoped, tag = 'scoped memory for tpu_custom_call.1']
    #allocation4 [shape = 's32[1]{0}', space=sflag, size = 0x4, scoped, tag = 'scoped memory for tpu_custom_call.1']
    #allocation5 [shape = 's32[1]{0}', space=sflag, size = 0x4, scoped, tag = 'scoped memory for tpu_custom_call.1']
    #allocation6 [shape = 'u8[57344]{0}', space=vmem, size = 0xe000, scoped, tag = 'input window, operand 1, single buffered']
    #allocation7 [shape = 'u8[4096]{0}', space=vmem, size = 0x1000, scoped, tag = 'output window, operand 0, single buffered']
    %7 = vsyncpa [#allocation5], 0
    %8 = vsyncpa [#allocation3], 0
    %9 = vsyncpa [#allocation4], 0
    // Predicated region
    $region2: #{tpu_custom_call.1} parent=1 // pred_check
      _
    $region3: #{tpu_custom_call.1} parent=1 // pred_check_branch
      %11 = sbr.rel (0) target = $region5
    $region4: #{tpu_custom_call.1} parent=1 // pred_region
      %s13 = ssub.s32 16, 16
      %14 = vsyncadd [#allocation5], %s13
      %17 = dma.hbm_to_smem %s0, 16, [#allocation2], [#allocation5]
    $region5: #{tpu_custom_call.1} parent=1 // pred_fallthru
      _
    // Predicated region
    $region6: #{tpu_custom_call.1} parent=1 // pred_check
      _
    $region7: #{tpu_custom_call.1} parent=1 // pred_check_branch
      %19 = sbr.rel (0) target = $region9
    $region8: #{tpu_custom_call.1} parent=1 // pred_region
      %s21 = ssub.s32 1792, 1792
      %22 = vsyncadd [#allocation3], %s21
      %s23 = sshll.u32 [#allocation6], 4
      %s24 = int_to_ptr.vmem [resolvable:$true] %s23
      %29 = dma.hbm_to_vmem [thread:$0]  %s1, 1792, %s24, [#allocation3], 128, 128, 8
    $region9: #{tpu_custom_call.1} parent=1 // pred_fallthru
      _
    // Predicated region
    $region10: #{tpu_custom_call.1} parent=1 // pred_check
      _
    $region11: #{tpu_custom_call.1} parent=1 // pred_check_branch
      %31 = sbr.rel (0) target = $region13
    $region12: #{tpu_custom_call.1} parent=1 // pred_region
      %32 = dma.done [#allocation5], 16
    $region13: #{tpu_custom_call.1} parent=1 // pred_fallthru
      _
    // Predicated region
    $region14: #{tpu_custom_call.1} parent=1 // pred_check
      _
    $region15: #{tpu_custom_call.1} parent=1 // pred_check_branch
      %34 = sbr.rel (0) target = $region17
    $region16: #{tpu_custom_call.1} parent=1 // pred_region
      %35 = dma.done [#allocation3], 1792
    $region17: #{tpu_custom_call.1} parent=1 // pred_fallthru
      _
    %36 = sfence
    %s37 = sld [smem:[#allocation2]]
    %s38 = sadd.s32 %s37, 43
    %s39 = scalar_lea.vmem [#allocation6], %s38
    %v40 = vld [vmem:[%s39] sm:$0x1]
    %v41 = vld [vmem:[#allocation6] sm:$0x1]
    %v42 = vadd.f32 %v40, %v41
    %s43 = sld [smem:[#allocation2 + $0x1]]
    %s44 = sadd.s32 %s43, 43
    %s45 = scalar_lea.vmem [#allocation6], %s44
    %v46 = vld [vmem:[%s45] sm:$0x1]
    %v47 = vld [vmem:[#allocation6 + $0x1] sm:$0x1]
    %v48 = vadd.f32 %v46, %v47
    %s49 = sld [smem:[#allocation2 + $0x2]]
    %s50 = sadd.s32 %s49, 43
    %s51 = scalar_lea.vmem [#allocation6], %s50
    %v52 = vld [vmem:[%s51] sm:$0x1]
    %v53 = vld [vmem:[#allocation6 + $0x2] sm:$0x1]
    %v54 = vadd.f32 %v52, %v53
    %s55 = sld [smem:[#allocation2 + $0x3]]
    %s56 = sadd.s32 %s55, 43
    %s57 = scalar_lea.vmem [#allocation6], %s56
    %v58 = vld [vmem:[%s57] sm:$0x1]
    %v59 = vld [vmem:[#allocation6 + $0x3] sm:$0x1]
    %v60 = vadd.f32 %v58, %v59
    %s61 = sld [smem:[#allocation2 + $0x4]]
    %s62 = sadd.s32 %s61, 43
    %s63 = scalar_lea.vmem [#allocation6], %s62
    %v64 = vld [vmem:[%s63] sm:$0x1]
    %v65 = vadd.f32 %v64, %v41
    %s66 = sld [smem:[#allocation2 + $0x5]]
    %s67 = sadd.s32 %s66, 43
    %s68 = scalar_lea.vmem [#allocation6], %s67
    %v69 = vld [vmem:[%s68] sm:$0x1]
    %v70 = vadd.f32 %v69, %v47
    %s71 = sld [smem:[#allocation2 + $0x6]]
    %s72 = sadd.s32 %s71, 43
    %s73 = scalar_lea.vmem [#allocation6], %s72
    %v74 = vld [vmem:[%s73] sm:$0x1]
    %v75 = vadd.f32 %v74, %v53
    %s76 = sld [smem:[#allocation2 + $0x7]]
    %s77 = sadd.s32 %s76, 43
    %s78 = scalar_lea.vmem [#allocation6], %s77
    %v79 = vld [vmem:[%s78] sm:$0x1]
    %v80 = vadd.f32 %v79, %v59
    %v82 = vrot.slane %v48, 7
    %v85 = vrot.slane %v54, 6
    %v88 = vrot.slane %v60, 5
    %v91 = vrot.slane %v65, 4
    %v94 = vrot.slane %v70, 3
    %v97 = vrot.slane %v75, 2
    %v100 = vrot.slane %v80, 1
    %vm102 = vcmask 1040384
    %v103 = vsel %vm102, %v42, %v82
    %vm104 = vcmask 1041408
    %v105 = vsel %vm104, %v103, %v85
    %vm106 = vcmask 1042432
    %v107 = vsel %vm106, %v105, %v88
    %vm108 = vcmask 1043456
    %v109 = vsel %vm108, %v107, %v91
    %vm110 = vcmask 1044480
    %v111 = vsel %vm110, %v109, %v94
    %vm112 = vcmask 1045504
    %v113 = vsel %vm112, %v111, %v97
    %vm114 = vcmask 1046528
    %v115 = vsel %vm114, %v113, %v100
    %v116 = vld [vmem:[#allocation6 + $0x4] sm:$0x1]
    %v117 = vld [vmem:[#allocation6 + $0x5] sm:$0x1]
    %vm118 = vcmask 23552
    %v119 = vsel %vm118, %v115, 0.0
    %120 = vadd.xlane.f32.xlu0 %v119
    %v121 = vpop.xlane.xlu0 %120
    %v122 = vrcp.pop 3.0
    %v123 = vmul.f32 %v121, %v122
    %v124 = vsub.f32 %v115, %v123
    %v125 = vmul.f32 %v124, %v124
    %v126 = vsel %vm118, %v125, 0.0
    %127 = vadd.xlane.f32.xlu0 %v126
    %v128 = vpop.xlane.xlu0 %127
    %v129 = vmul.f32 %v128, %v122
    %v130 = vadd.f32 %v129, 1e-05
    %v131 = vrsqrt.pop %v130
    %v132 = vmul.f32 %v124, %v131
    %v133 = vlaneseq
    %v134 = vshrl.u32 %v133, 7
    %v135 = vsub.s32 0, %v134
    %v136 = vrot.slane %v116, %v135
    %v137 = vmul.f32 %v136, %v132
    %v138 = vlaneseq
    %v139 = vshrl.u32 %v138, 7
    %v140 = vsub.s32 0, %v139
    %v141 = vrot.slane %v117, %v140
    %v142 = vadd.f32 %v137, %v141
    %v143 = vld [vmem:[#allocation6 + $0x6] sm:$0x7]
    %v145 = vsel %vm118, %v142, 0
    %v148 = vsel %vm106, %v143, 0
    %150 = vmatprep.subr.mxu0 0.0
    %151 = vmatpush1.msra.mxu0 %v148
    %152 = vmatprep.subr.mxu0 0.0
    %153 = vmatpush1.msra.mxu0 0.0
    %154 = vmatprep.subr.mxu0 0.0
    %155 = vmatpush1.msra.mxu0 0.0
    %156 = vmatprep.subr.mxu0 0.0
    %157 = vmatpush1.msra.mxu0 0.0
    %158 = vmatprep.subr.mxu0 0.0
    %159 = vmatpush1.msra.mxu0 0.0
    %160 = vmatprep.subr.mxu0 0.0
    %161 = vmatpush1.msra.mxu0 0.0
    %162 = vmatprep.subr.mxu0 0.0
    %163 = vmatpush1.msra.mxu0 0.0
    %164 = vmatprep.subr.mxu0 0.0
    %165 = vmatpush1.msra.mxu0 0.0
    %166 = vmatprep.subr.mxu0 0.0
    %167 = vmatpush1.msra.mxu0 0.0
    %168 = vmatprep.subr.mxu0 0.0
    %169 = vmatpush1.msra.mxu0 0.0
    %170 = vmatprep.subr.mxu0 0.0
    %171 = vmatpush1.msra.mxu0 0.0
    %172 = vmatprep.subr.mxu0 0.0
    %173 = vmatpush1.msra.mxu0 0.0
    %174 = vmatprep.subr.mxu0 0.0
    %175 = vmatpush1.msra.mxu0 0.0
    %176 = vmatprep.subr.mxu0 0.0
    %177 = vmatpush1.msra.mxu0 0.0
    %178 = vmatprep.subr.mxu0 0.0
    %179 = vmatpush1.msra.mxu0 0.0
    %180 = vmatprep.subr.mxu0 0.0
    %181 = vmatpush1.msra.mxu0 0.0
    %182 = vmatprep.subr.mxu0 0.0
    %183 = vmatpush1.msra.mxu0 0.0
    %184 = vmatprep.subr.mxu0 0.0
    %185 = vmatpush1.msra.mxu0 0.0
    %186 = vmatprep.subr.mxu0 0.0
    %187 = vmatpush1.msra.mxu0 0.0
    %188 = vmatprep.subr.mxu0 0.0
    %189 = vmatpush1.msra.mxu0 0.0
    %190 = vmatprep.subr.mxu0 0.0
    %191 = vmatpush1.msra.mxu0 0.0
    %192 = vmatprep.subr.mxu0 0.0
    %193 = vmatpush1.msra.mxu0 0.0
    %194 = vmatprep.subr.mxu0 0.0
    %195 = vmatpush1.msra.mxu0 0.0
    %196 = vmatprep.subr.mxu0 0.0
    %197 = vmatpush1.msra.mxu0 0.0
    %198 = vmatprep.subr.mxu0 0.0
    %199 = vmatpush1.msra.mxu0 0.0
    %200 = vmatprep.subr.mxu0 0.0
    %201 = vmatpush1.msra.mxu0 0.0
    %202 = vmatprep.subr.mxu0 0.0
    %203 = vmatpush1.msra.mxu0 0.0
    %204 = vmatprep.subr.mxu0 0.0
    %205 = vmatpush1.msra.mxu0 0.0
    %206 = vmatprep.subr.mxu0 0.0
    %207 = vmatpush1.msra.mxu0 0.0
    %208 = vmatprep.subr.mxu0 0.0
    %209 = vmatpush1.msra.mxu0 0.0
    %210 = vmatprep.subr.mxu0 0.0
    %211 = vmatpush1.msra.mxu0 0.0
    %212 = vmatprep.subr.mxu0 0.0
    %213 = vmatpush1.msra.mxu0 0.0
    %214 = vmatprep.mubr.f32.mxu0 0.0
    %215 = vmatmul.mubr.f32.gmra.mrb[0].mxu0 %v145
    %v216 = vpop.f32.mrb[0].mxu0
    %v217 = vadd.f32 0.0, %v216
    %v218 = vpop.f32.mrb[0].mxu0
    %219 = vdwg.mxu0
    %v220 = vld [vmem:[#allocation6 + $0x9] sm:$0x7]
    %v222 = vsel %vm106, %v220, 0
    %224 = vmatprep.subr.mxu0 0.0
    %225 = vmatpush1.msra.mxu0 %v222
    %226 = vmatprep.subr.mxu0 0.0
    %227 = vmatpush1.msra.mxu0 0.0
    %228 = vmatprep.subr.mxu0 0.0
    %229 = vmatpush1.msra.mxu0 0.0
    %230 = vmatprep.subr.mxu0 0.0
    %231 = vmatpush1.msra.mxu0 0.0
    %232 = vmatprep.subr.mxu0 0.0
    %233 = vmatpush1.msra.mxu0 0.0
    %234 = vmatprep.subr.mxu0 0.0
    %235 = vmatpush1.msra.mxu0 0.0
    %236 = vmatprep.subr.mxu0 0.0
    %237 = vmatpush1.msra.mxu0 0.0
    %238 = vmatprep.subr.mxu0 0.0
    %239 = vmatpush1.msra.mxu0 0.0
    %240 = vmatprep.subr.mxu0 0.0
    %241 = vmatpush1.msra.mxu0 0.0
    %242 = vmatprep.subr.mxu0 0.0
    %243 = vmatpush1.msra.mxu0 0.0
    %244 = vmatprep.subr.mxu0 0.0
    %245 = vmatpush1.msra.mxu0 0.0
    %246 = vmatprep.subr.mxu0 0.0
    %247 = vmatpush1.msra.mxu0 0.0
    %248 = vmatprep.subr.mxu0 0.0
    %249 = vmatpush1.msra.mxu0 0.0
    %250 = vmatprep.subr.mxu0 0.0
    %251 = vmatpush1.msra.mxu0 0.0
    %252 = vmatprep.subr.mxu0 0.0
    %253 = vmatpush1.msra.mxu0 0.0
    %254 = vmatprep.subr.mxu0 0.0
    %255 = vmatpush1.msra.mxu0 0.0
    %256 = vmatprep.subr.mxu0 0.0
    %257 = vmatpush1.msra.mxu0 0.0
    %258 = vmatprep.subr.mxu0 0.0
    %259 = vmatpush1.msra.mxu0 0.0
    %260 = vmatprep.subr.mxu0 0.0
    %261 = vmatpush1.msra.mxu0 0.0
    %262 = vmatprep.subr.mxu0 0.0
    %263 = vmatpush1.msra.mxu0 0.0
    %264 = vmatprep.subr.mxu0 0.0
    %265 = vmatpush1.msra.mxu0 0.0
    %266 = vmatprep.subr.mxu0 0.0
    %267 = vmatpush1.msra.mxu0 0.0
    %268 = vmatprep.subr.mxu0 0.0
    %269 = vmatpush1.msra.mxu0 0.0
    %270 = vmatprep.subr.mxu0 0.0
    %271 = vmatpush1.msra.mxu0 0.0
    %272 = vmatprep.subr.mxu0 0.0
    %273 = vmatpush1.msra.mxu0 0.0
    %274 = vmatprep.subr.mxu0 0.0
    %275 = vmatpush1.msra.mxu0 0.0
    %276 = vmatprep.subr.mxu0 0.0
    %277 = vmatpush1.msra.mxu0 0.0
    %278 = vmatprep.subr.mxu0 0.0
    %279 = vmatpush1.msra.mxu0 0.0
    %280 = vmatprep.subr.mxu0 0.0
    %281 = vmatpush1.msra.mxu0 0.0
    %282 = vmatprep.subr.mxu0 0.0
    %283 = vmatpush1.msra.mxu0 0.0
    %284 = vmatprep.subr.mxu0 0.0
    %285 = vmatpush1.msra.mxu0 0.0
    %286 = vmatprep.subr.mxu0 0.0
    %287 = vmatpush1.msra.mxu0 0.0
    %288 = vmatprep.mubr.f32.mxu0 0.0
    %289 = vmatmul.mubr.f32.gmra.mrb[0].mxu0 %v145
    %v290 = vpop.f32.mrb[0].mxu0
    %v291 = vadd.f32 0.0, %v290
    %v292 = vpop.f32.mrb[0].mxu0
    %293 = vdwg.mxu0
    %v294 = vld [vmem:[#allocation6 + $0xc] sm:$0x7]
    %v296 = vsel %vm106, %v294, 0
    %298 = vmatprep.subr.mxu0 0.0
    %299 = vmatpush1.msra.mxu0 %v296
    %300 = vmatprep.subr.mxu0 0.0
    %301 = vmatpush1.msra.mxu0 0.0
    %302 = vmatprep.subr.mxu0 0.0
    %303 = vmatpush1.msra.mxu0 0.0
    %304 = vmatprep.subr.mxu0 0.0
    %305 = vmatpush1.msra.mxu0 0.0
    %306 = vmatprep.subr.mxu0 0.0
    %307 = vmatpush1.msra.mxu0 0.0
    %308 = vmatprep.subr.mxu0 0.0
    %309 = vmatpush1.msra.mxu0 0.0
    %310 = vmatprep.subr.mxu0 0.0
    %311 = vmatpush1.msra.mxu0 0.0
    %312 = vmatprep.subr.mxu0 0.0
    %313 = vmatpush1.msra.mxu0 0.0
    %314 = vmatprep.subr.mxu0 0.0
    %315 = vmatpush1.msra.mxu0 0.0
    %316 = vmatprep.subr.mxu0 0.0
    %317 = vmatpush1.msra.mxu0 0.0
    %318 = vmatprep.subr.mxu0 0.0
    %319 = vmatpush1.msra.mxu0 0.0
    %320 = vmatprep.subr.mxu0 0.0
    %321 = vmatpush1.msra.mxu0 0.0
    %322 = vmatprep.subr.mxu0 0.0
    %323 = vmatpush1.msra.mxu0 0.0
    %324 = vmatprep.subr.mxu0 0.0
    %325 = vmatpush1.msra.mxu0 0.0
    %326 = vmatprep.subr.mxu0 0.0
    %327 = vmatpush1.msra.mxu0 0.0
    %328 = vmatprep.subr.mxu0 0.0
    %329 = vmatpush1.msra.mxu0 0.0
    %330 = vmatprep.subr.mxu0 0.0
    %331 = vmatpush1.msra.mxu0 0.0
    %332 = vmatprep.subr.mxu0 0.0
    %333 = vmatpush1.msra.mxu0 0.0
    %334 = vmatprep.subr.mxu0 0.0
    %335 = vmatpush1.msra.mxu0 0.0
    %336 = vmatprep.subr.mxu0 0.0
    %337 = vmatpush1.msra.mxu0 0.0
    %338 = vmatprep.subr.mxu0 0.0
    %339 = vmatpush1.msra.mxu0 0.0
    %340 = vmatprep.subr.mxu0 0.0
    %341 = vmatpush1.msra.mxu0 0.0
    %342 = vmatprep.subr.mxu0 0.0
    %343 = vmatpush1.msra.mxu0 0.0
    %344 = vmatprep.subr.mxu0 0.0
    %345 = vmatpush1.msra.mxu0 0.0
    %346 = vmatprep.subr.mxu0 0.0
    %347 = vmatpush1.msra.mxu0 0.0
    %348 = vmatprep.subr.mxu0 0.0
    %349 = vmatpush1.msra.mxu0 0.0
    %350 = vmatprep.subr.mxu0 0.0
    %351 = vmatpush1.msra.mxu0 0.0
    %352 = vmatprep.subr.mxu0 0.0
    %353 = vmatpush1.msra.mxu0 0.0
    %354 = vmatprep.subr.mxu0 0.0
    %355 = vmatpush1.msra.mxu0 0.0
    %356 = vmatprep.subr.mxu0 0.0
    %357 = vmatpush1.msra.mxu0 0.0
    %358 = vmatprep.subr.mxu0 0.0
    %359 = vmatpush1.msra.mxu0 0.0
    %360 = vmatprep.subr.mxu0 0.0
    %361 = vmatpush1.msra.mxu0 0.0
    %362 = vmatprep.mubr.f32.mxu0 0.0
    %363 = vmatmul.mubr.f32.gmra.mrb[0].mxu0 %v145
    %v364 = vpop.f32.mrb[0].mxu0
    %v365 = vadd.f32 0.0, %v364
    %v366 = vpop.f32.mrb[0].mxu0
    %367 = vdwg.mxu0
    %v369 = vcombine.high %v217, %v217
    %v371 = vunpack.c.l.s4 1966171168
    %v372 = vunpack.c.0.s8 %v371
    %v373 = vlaneseq
    %v374 = vshrl.u32 %v373, 7
    %v375 = vsub.s32 %v372, %v374
    %v376 = vrot.slane %v217, %v375
    %v378 = vunpack.c.l.s4 1966171168
    %v379 = vunpack.c.0.s8 %v378
    %v380 = vlaneseq
    %v381 = vshrl.u32 %v380, 7
    %v382 = vsub.s32 %v379, %v381
    %v383 = vrot.slane %v369, %v382
    %v384 = vcombine.high %v376, %v376
    %v385 = vcombine.high %v383, %v383
    %v387 = vunpack.c.l.s4 1966171168
    %v388 = vunpack.c.0.s8 %v387
    %v389 = vlaneseq
    %v390 = vshrl.u32 %v389, 7
    %v391 = vsub.s32 %v388, %v390
    %v392 = vrot.slane %v376, %v391
    %v394 = vunpack.c.l.s4 1966171168
    %v395 = vunpack.c.0.s8 %v394
    %v396 = vlaneseq
    %v397 = vshrl.u32 %v396, 7
    %v398 = vsub.s32 %v395, %v397
    %v399 = vrot.slane %v383, %v398
    %v401 = vunpack.c.l.s4 1966171168
    %v402 = vunpack.c.0.s8 %v401
    %v403 = vlaneseq
    %v404 = vshrl.u32 %v403, 7
    %v405 = vsub.s32 %v402, %v404
    %v406 = vrot.slane %v384, %v405
    %v408 = vunpack.c.l.s4 1966171168
    %v409 = vunpack.c.0.s8 %v408
    %v410 = vlaneseq
    %v411 = vshrl.u32 %v410, 7
    %v412 = vsub.s32 %v409, %v411
    %v413 = vrot.slane %v385, %v412
    %v414 = vcombine.high %v392, %v392
    %v415 = vcombine.high %v399, %v399
    %v416 = vcombine.high %v406, %v406
    %v417 = vcombine.high %v413, %v413
    %v419 = vcombine.high %v291, %v291
    %v421 = vlaneseq
    %v422 = vshrl.u32 %v421, 7
    %v423 = vsub.s32 0, %v422
    %v424 = vrot.slane %v392, %v423
    %v425 = vlaneseq
    %v426 = vshrl.u32 %v425, 7
    %v427 = vsub.s32 0, %v426
    %v428 = vrot.slane %v406, %v427
    %v429 = vlaneseq
    %v430 = vshrl.u32 %v429, 7
    %v431 = vsub.s32 0, %v430
    %v432 = vrot.slane %v414, %v431
    %v433 = vlaneseq
    %v434 = vshrl.u32 %v433, 7
    %v435 = vsub.s32 0, %v434
    %v436 = vrot.slane %v416, %v435
    %v437 = vlaneseq
    %v438 = vshrl.u32 %v437, 7
    %v439 = vsub.s32 0, %v438
    %v440 = vrot.slane %v399, %v439
    %v441 = vlaneseq
    %v442 = vshrl.u32 %v441, 7
    %v443 = vsub.s32 0, %v442
    %v444 = vrot.slane %v413, %v443
    %v445 = vlaneseq
    %v446 = vshrl.u32 %v445, 7
    %v447 = vsub.s32 0, %v446
    %v448 = vrot.slane %v415, %v447
    %v449 = vlaneseq
    %v450 = vshrl.u32 %v449, 7
    %v451 = vsub.s32 0, %v450
    %v452 = vrot.slane %v417, %v451
    %v461 = vmul.f32 %v424, %v291
    %v462 = vmul.f32 %v428, %v291
    %v463 = vmul.f32 %v432, %v291
    %v464 = vmul.f32 %v436, %v291
    %v465 = vmul.f32 %v440, %v419
    %v466 = vmul.f32 %v444, %v419
    %v467 = vmul.f32 %v448, %v419
    %v468 = vmul.f32 %v452, %v419
    %vm469 = vcmask 19456
    %v470 = vsel %vm469, %v461, 0.0
    %471 = vadd.xlane.f32.xlu0 %v470
    %v472 = vpop.xlane.xlu0 %471
    %v473 = vsel %vm469, %v462, 0.0
    %474 = vadd.xlane.f32.xlu0 %v473
    %v475 = vpop.xlane.xlu0 %474
    %v476 = vsel %vm469, %v463, 0.0
    %477 = vadd.xlane.f32.xlu0 %v476
    %v478 = vpop.xlane.xlu0 %477
    %v479 = vsel %vm469, %v464, 0.0
    %480 = vadd.xlane.f32.xlu0 %v479
    %v481 = vpop.xlane.xlu0 %480
    %v482 = vsel %vm469, %v465, 0.0
    %483 = vadd.xlane.f32.xlu0 %v482
    %v484 = vpop.xlane.xlu0 %483
    %v485 = vsel %vm469, %v466, 0.0
    %486 = vadd.xlane.f32.xlu0 %v485
    %v487 = vpop.xlane.xlu0 %486
    %v488 = vsel %vm469, %v467, 0.0
    %489 = vadd.xlane.f32.xlu0 %v488
    %v490 = vpop.xlane.xlu0 %489
    %v491 = vsel %vm469, %v468, 0.0
    %492 = vadd.xlane.f32.xlu0 %v491
    %v493 = vpop.xlane.xlu0 %492
    %v494 = vmul.f32 %v472, 0.57735026
    %v495 = vmul.f32 %v475, 0.57735026
    %v496 = vmul.f32 %v478, 0.57735026
    %v497 = vmul.f32 %v481, 0.57735026
    %v498 = vmul.f32 %v484, 0.57735026
    %v499 = vmul.f32 %v487, 0.57735026
    %v500 = vmul.f32 %v490, 0.57735026
    %v501 = vmul.f32 %v493, 0.57735026
    %v502 = vlaneseq
    %v503 = vshrl.u32 %v502, 7
    %v504 = vlaneseq
    %v505 = vand.u32 %v504, 127
    %vm506 = vcmp.gt.s32.totalorder %v505, %v503
    %v507 = vsel %vm506, 1, 0
    %vm508 = vcmp.eq.s32.totalorder %v507, 1
    %v517 = vlaneseq
    %v518 = vshrl.u32 %v517, 7
    %v519 = vsub.s32 %v505, %v518
    %v520 = vrot.slane %v494, %v519
    %v521 = vlaneseq
    %v522 = vshrl.u32 %v521, 7
    %v523 = vsub.s32 %v505, %v522
    %v524 = vrot.slane %v495, %v523
    %v525 = vlaneseq
    %v526 = vshrl.u32 %v525, 7
    %v527 = vsub.s32 %v505, %v526
    %v528 = vrot.slane %v496, %v527
    %v529 = vlaneseq
    %v530 = vshrl.u32 %v529, 7
    %v531 = vsub.s32 %v505, %v530
    %v532 = vrot.slane %v497, %v531
    %v533 = vlaneseq
    %v534 = vshrl.u32 %v533, 7
    %v535 = vsub.s32 %v505, %v534
    %v536 = vrot.slane %v498, %v535
    %v537 = vlaneseq
    %v538 = vshrl.u32 %v537, 7
    %v539 = vsub.s32 %v505, %v538
    %v540 = vrot.slane %v499, %v539
    %v541 = vlaneseq
    %v542 = vshrl.u32 %v541, 7
    %v543 = vsub.s32 %v505, %v542
    %v544 = vrot.slane %v500, %v543
    %v545 = vlaneseq
    %v546 = vshrl.u32 %v545, 7
    %v547 = vsub.s32 %v505, %v546
    %v548 = vrot.slane %v501, %v547
    %vm549 = vcmask 1041409
    %v550 = vsel %vm549, %v524, %v520
    %vm551 = vcmask 1042434
    %v552 = vsel %vm551, %v528, %v550
    %vm553 = vcmask 1043459
    %v554 = vsel %vm553, %v532, %v552
    %v555 = vsel %vm549, %v540, %v536
    %v556 = vsel %vm551, %v544, %v555
    %v557 = vsel %vm553, %v548, %v556
    %v560 = vsel %vm508, -inf, %v554
    %v561 = vsel %vm508, -inf, %v557
    %vm562 = vcmask 27648
    %v563 = vsel %vm562, %v560, -inf
    %564 = vmax.xlane.f32.xlu0 %v563
    %v565 = vpop.xlane.xlu0 %564
    %v566 = vsel %vm562, %v561, -inf
    %567 = vmax.xlane.f32.xlu0 %v566
    %v568 = vpop.xlane.xlu0 %567
    %v569 = vsub.f32 %v560, %v565
    %v570 = vsub.f32 %v561, %v568
    %v571 = vmul.f32 %v569, 1.442695
    %v572 = vpow.pop %v571
    %v573 = vmul.f32 %v570, 1.442695
    %v574 = vpow.pop %v573
    %v575 = vsel %vm562, %v572, 0.0
    %576 = vadd.xlane.f32.xlu0 %v575
    %v577 = vpop.xlane.xlu0 %576
    %v578 = vsel %vm562, %v574, 0.0
    %579 = vadd.xlane.f32.xlu0 %v578
    %v580 = vpop.xlane.xlu0 %579
    %v581 = vrcp.pop %v577
    %v582 = vrcp.pop %v580
    %v583 = vmul.f32 %v572, %v581
    %v584 = vmul.f32 %v574, %v582
    %v585 = vlaneseq
    %v586 = vshrl.u32 %v585, 7
    %v587 = vsub.s32 0, %v586
    %v588 = vrot.slane %v583, %v587
    %590 = vbcast.lane.b32.xlu0 %v588, 256
    %v591 = vpop.permute.xlu0 %590
    %v592 = vlaneseq
    %v593 = vshrl.u32 %v592, 7
    %v594 = vsub.s32 1, %v593
    %v595 = vrot.slane %v583, %v594
    %597 = vbcast.lane.b32.xlu0 %v595, 256
    %v598 = vpop.permute.xlu0 %597
    %v599 = vlaneseq
    %v600 = vshrl.u32 %v599, 7
    %v601 = vsub.s32 2, %v600
    %v602 = vrot.slane %v583, %v601
    %604 = vbcast.lane.b32.xlu0 %v602, 256
    %v605 = vpop.permute.xlu0 %604
    %v606 = vlaneseq
    %v607 = vshrl.u32 %v606, 7
    %v608 = vsub.s32 3, %v607
    %v609 = vrot.slane %v583, %v608
    %611 = vbcast.lane.b32.xlu0 %v609, 256
    %v612 = vpop.permute.xlu0 %611
    %v613 = vlaneseq
    %v614 = vshrl.u32 %v613, 7
    %v615 = vsub.s32 0, %v614
    %v616 = vrot.slane %v584, %v615
    %618 = vbcast.lane.b32.xlu0 %v616, 256
    %v619 = vpop.permute.xlu0 %618
    %v620 = vlaneseq
    %v621 = vshrl.u32 %v620, 7
    %v622 = vsub.s32 1, %v621
    %v623 = vrot.slane %v584, %v622
    %625 = vbcast.lane.b32.xlu0 %v623, 256
    %v626 = vpop.permute.xlu0 %625
    %v627 = vlaneseq
    %v628 = vshrl.u32 %v627, 7
    %v629 = vsub.s32 2, %v628
    %v630 = vrot.slane %v584, %v629
    %632 = vbcast.lane.b32.xlu0 %v630, 256
    %v633 = vpop.permute.xlu0 %632
    %v634 = vlaneseq
    %v635 = vshrl.u32 %v634, 7
    %v636 = vsub.s32 3, %v635
    %v637 = vrot.slane %v584, %v636
    %639 = vbcast.lane.b32.xlu0 %v637, 256
    %v640 = vpop.permute.xlu0 %639
    %v642 = vcombine.high %v365, %v365
    %v644 = vmul.f32 %v591, %v365
    %v645 = vmul.f32 %v598, %v365
    %v646 = vmul.f32 %v605, %v365
    %v647 = vmul.f32 %v612, %v365
    %v648 = vmul.f32 %v619, %v642
    %v649 = vmul.f32 %v626, %v642
    %v650 = vmul.f32 %v633, %v642
    %v651 = vmul.f32 %v640, %v642
    %v652 = vsel %vm469, %v644, 0.0
    %v653 = vrot.slane %v652, 4
    %v654 = vadd.f32 %v652, %v653
    %v655 = vrot.slane %v654, 2
    %v656 = vadd.f32 %v654, %v655
    %v657 = vrot.slane %v656, 1
    %v658 = vadd.f32 %v656, %v657
    %v659 = vsel %vm469, %v645, 0.0
    %v660 = vrot.slane %v659, 4
    %v661 = vadd.f32 %v659, %v660
    %v662 = vrot.slane %v661, 2
    %v663 = vadd.f32 %v661, %v662
    %v664 = vrot.slane %v663, 1
    %v665 = vadd.f32 %v663, %v664
    %v666 = vsel %vm469, %v646, 0.0
    %v667 = vrot.slane %v666, 4
    %v668 = vadd.f32 %v666, %v667
    %v669 = vrot.slane %v668, 2
    %v670 = vadd.f32 %v668, %v669
    %v671 = vrot.slane %v670, 1
    %v672 = vadd.f32 %v670, %v671
    %v673 = vsel %vm469, %v647, 0.0
    %v674 = vrot.slane %v673, 4
    %v675 = vadd.f32 %v673, %v674
    %v676 = vrot.slane %v675, 2
    %v677 = vadd.f32 %v675, %v676
    %v678 = vrot.slane %v677, 1
    %v679 = vadd.f32 %v677, %v678
    %v680 = vsel %vm469, %v648, 0.0
    %v681 = vrot.slane %v680, 4
    %v682 = vadd.f32 %v680, %v681
    %v683 = vrot.slane %v682, 2
    %v684 = vadd.f32 %v682, %v683
    %v685 = vrot.slane %v684, 1
    %v686 = vadd.f32 %v684, %v685
    %v687 = vsel %vm469, %v649, 0.0
    %v688 = vrot.slane %v687, 4
    %v689 = vadd.f32 %v687, %v688
    %v690 = vrot.slane %v689, 2
    %v691 = vadd.f32 %v689, %v690
    %v692 = vrot.slane %v691, 1
    %v693 = vadd.f32 %v691, %v692
    %v694 = vsel %vm469, %v650, 0.0
    %v695 = vrot.slane %v694, 4
    %v696 = vadd.f32 %v694, %v695
    %v697 = vrot.slane %v696, 2
    %v698 = vadd.f32 %v696, %v697
    %v699 = vrot.slane %v698, 1
    %v700 = vadd.f32 %v698, %v699
    %v701 = vsel %vm469, %v651, 0.0
    %v702 = vrot.slane %v701, 4
    %v703 = vadd.f32 %v701, %v702
    %v704 = vrot.slane %v703, 2
    %v705 = vadd.f32 %v703, %v704
    %v706 = vrot.slane %v705, 1
    %v707 = vadd.f32 %v705, %v706
    %v708 = vld [vmem:[#allocation6 + $0xf] sm:$0x7]
    %v709 = vld [vmem:[#allocation6 + $0x12] sm:$0x1]
    %v710 = vlaneseq
    %v711 = vshrl.u32 %v710, 7
    %v712 = vsub.s32 0, %v711
    %v713 = vrot.slane %v709, %v712
    %v722 = vsel %vm549, %v665, %v658
    %v723 = vsel %vm551, %v672, %v722
    %v724 = vsel %vm553, %v679, %v723
    %vm725 = vcmask 1044484
    %v726 = vsel %vm725, %v686, %v724
    %vm727 = vcmask 1045509
    %v728 = vsel %vm727, %v693, %v726
    %vm729 = vcmask 1046534
    %v730 = vsel %vm729, %v700, %v728
    %vm731 = vcmask 1047559
    %v732 = vsel %vm731, %v707, %v730
    %v733 = vsel %vm118, %v732, 0
    %v736 = vsel %vm106, %v708, 0
    %738 = vmatprep.subr.mxu0 0.0
    %739 = vmatpush1.msra.mxu0 %v736
    %740 = vmatprep.subr.mxu0 0.0
    %741 = vmatpush1.msra.mxu0 0.0
    %742 = vmatprep.subr.mxu0 0.0
    %743 = vmatpush1.msra.mxu0 0.0
    %744 = vmatprep.subr.mxu0 0.0
    %745 = vmatpush1.msra.mxu0 0.0
    %746 = vmatprep.subr.mxu0 0.0
    %747 = vmatpush1.msra.mxu0 0.0
    %748 = vmatprep.subr.mxu0 0.0
    %749 = vmatpush1.msra.mxu0 0.0
    %750 = vmatprep.subr.mxu0 0.0
    %751 = vmatpush1.msra.mxu0 0.0
    %752 = vmatprep.subr.mxu0 0.0
    %753 = vmatpush1.msra.mxu0 0.0
    %754 = vmatprep.subr.mxu0 0.0
    %755 = vmatpush1.msra.mxu0 0.0
    %756 = vmatprep.subr.mxu0 0.0
    %757 = vmatpush1.msra.mxu0 0.0
    %758 = vmatprep.subr.mxu0 0.0
    %759 = vmatpush1.msra.mxu0 0.0
    %760 = vmatprep.subr.mxu0 0.0
    %761 = vmatpush1.msra.mxu0 0.0
    %762 = vmatprep.subr.mxu0 0.0
    %763 = vmatpush1.msra.mxu0 0.0
    %764 = vmatprep.subr.mxu0 0.0
    %765 = vmatpush1.msra.mxu0 0.0
    %766 = vmatprep.subr.mxu0 0.0
    %767 = vmatpush1.msra.mxu0 0.0
    %768 = vmatprep.subr.mxu0 0.0
    %769 = vmatpush1.msra.mxu0 0.0
    %770 = vmatprep.subr.mxu0 0.0
    %771 = vmatpush1.msra.mxu0 0.0
    %772 = vmatprep.subr.mxu0 0.0
    %773 = vmatpush1.msra.mxu0 0.0
    %774 = vmatprep.subr.mxu0 0.0
    %775 = vmatpush1.msra.mxu0 0.0
    %776 = vmatprep.subr.mxu0 0.0
    %777 = vmatpush1.msra.mxu0 0.0
    %778 = vmatprep.subr.mxu0 0.0
    %779 = vmatpush1.msra.mxu0 0.0
    %780 = vmatprep.subr.mxu0 0.0
    %781 = vmatpush1.msra.mxu0 0.0
    %782 = vmatprep.subr.mxu0 0.0
    %783 = vmatpush1.msra.mxu0 0.0
    %784 = vmatprep.subr.mxu0 0.0
    %785 = vmatpush1.msra.mxu0 0.0
    %786 = vmatprep.subr.mxu0 0.0
    %787 = vmatpush1.msra.mxu0 0.0
    %788 = vmatprep.subr.mxu0 0.0
    %789 = vmatpush1.msra.mxu0 0.0
    %790 = vmatprep.subr.mxu0 0.0
    %791 = vmatpush1.msra.mxu0 0.0
    %792 = vmatprep.subr.mxu0 0.0
    %793 = vmatpush1.msra.mxu0 0.0
    %794 = vmatprep.subr.mxu0 0.0
    %795 = vmatpush1.msra.mxu0 0.0
    %796 = vmatprep.subr.mxu0 0.0
    %797 = vmatpush1.msra.mxu0 0.0
    %798 = vmatprep.subr.mxu0 0.0
    %799 = vmatpush1.msra.mxu0 0.0
    %800 = vmatprep.subr.mxu0 0.0
    %801 = vmatpush1.msra.mxu0 0.0
    %802 = vmatprep.mubr.f32.mxu0 0.0
    %803 = vmatmul.mubr.f32.gmra.mrb[0].mxu0 %v733
    %v804 = vpop.f32.mrb[0].mxu0
    %v805 = vadd.f32 %v713, %v804
    %v806 = vpop.f32.mrb[0].mxu0
    %807 = vdwg.mxu0
    %v808 = vadd.f32 %v115, %v805
    %v809 = vld [vmem:[#allocation6 + $0x13] sm:$0x1]
    %v810 = vld [vmem:[#allocation6 + $0x14] sm:$0x1]
    %v811 = vsel %vm118, %v808, 0.0
    %812 = vadd.xlane.f32.xlu0 %v811
    %v813 = vpop.xlane.xlu0 %812
    %v814 = vmul.f32 %v813, %v122
    %v815 = vsub.f32 %v808, %v814
    %v816 = vmul.f32 %v815, %v815
    %v817 = vsel %vm118, %v816, 0.0
    %818 = vadd.xlane.f32.xlu0 %v817
    %v819 = vpop.xlane.xlu0 %818
    %v820 = vmul.f32 %v819, %v122
    %v821 = vadd.f32 %v820, 1e-05
    %v822 = vrsqrt.pop %v821
    %v823 = vmul.f32 %v815, %v822
    %v824 = vlaneseq
    %v825 = vshrl.u32 %v824, 7
    %v826 = vsub.s32 0, %v825
    %v827 = vrot.slane %v809, %v826
    %v828 = vmul.f32 %v827, %v823
    %v829 = vlaneseq
    %v830 = vshrl.u32 %v829, 7
    %v831 = vsub.s32 0, %v830
    %v832 = vrot.slane %v810, %v831
    %v833 = vadd.f32 %v828, %v832
    %v834 = vld [vmem:[#allocation6 + $0x15] sm:$0x7]
    %v835 = vld [vmem:[#allocation6 + $0x18] sm:$0x1]
    %v836 = vlaneseq
    %v837 = vshrl.u32 %v836, 7
    %v838 = vsub.s32 0, %v837
    %v839 = vrot.slane %v835, %v838
    %v841 = vsel %vm118, %v833, 0
    %v844 = vsel %vm106, %v834, 0
    %846 = vmatprep.subr.mxu0 0.0
    %847 = vmatpush1.msra.mxu0 %v844
    %848 = vmatprep.subr.mxu0 0.0
    %849 = vmatpush1.msra.mxu0 0.0
    %850 = vmatprep.subr.mxu0 0.0
    %851 = vmatpush1.msra.mxu0 0.0
    %852 = vmatprep.subr.mxu0 0.0
    %853 = vmatpush1.msra.mxu0 0.0
    %854 = vmatprep.subr.mxu0 0.0
    %855 = vmatpush1.msra.mxu0 0.0
    %856 = vmatprep.subr.mxu0 0.0
    %857 = vmatpush1.msra.mxu0 0.0
    %858 = vmatprep.subr.mxu0 0.0
    %859 = vmatpush1.msra.mxu0 0.0
    %860 = vmatprep.subr.mxu0 0.0
    %861 = vmatpush1.msra.mxu0 0.0
    %862 = vmatprep.subr.mxu0 0.0
    %863 = vmatpush1.msra.mxu0 0.0
    %864 = vmatprep.subr.mxu0 0.0
    %865 = vmatpush1.msra.mxu0 0.0
    %866 = vmatprep.subr.mxu0 0.0
    %867 = vmatpush1.msra.mxu0 0.0
    %868 = vmatprep.subr.mxu0 0.0
    %869 = vmatpush1.msra.mxu0 0.0
    %870 = vmatprep.subr.mxu0 0.0
    %871 = vmatpush1.msra.mxu0 0.0
    %872 = vmatprep.subr.mxu0 0.0
    %873 = vmatpush1.msra.mxu0 0.0
    %874 = vmatprep.subr.mxu0 0.0
    %875 = vmatpush1.msra.mxu0 0.0
    %876 = vmatprep.subr.mxu0 0.0
    %877 = vmatpush1.msra.mxu0 0.0
    %878 = vmatprep.subr.mxu0 0.0
    %879 = vmatpush1.msra.mxu0 0.0
    %880 = vmatprep.subr.mxu0 0.0
    %881 = vmatpush1.msra.mxu0 0.0
    %882 = vmatprep.subr.mxu0 0.0
    %883 = vmatpush1.msra.mxu0 0.0
    %884 = vmatprep.subr.mxu0 0.0
    %885 = vmatpush1.msra.mxu0 0.0
    %886 = vmatprep.subr.mxu0 0.0
    %887 = vmatpush1.msra.mxu0 0.0
    %888 = vmatprep.subr.mxu0 0.0
    %889 = vmatpush1.msra.mxu0 0.0
    %890 = vmatprep.subr.mxu0 0.0
    %891 = vmatpush1.msra.mxu0 0.0
    %892 = vmatprep.subr.mxu0 0.0
    %893 = vmatpush1.msra.mxu0 0.0
    %894 = vmatprep.subr.mxu0 0.0
    %895 = vmatpush1.msra.mxu0 0.0
    %896 = vmatprep.subr.mxu0 0.0
    %897 = vmatpush1.msra.mxu0 0.0
    %898 = vmatprep.subr.mxu0 0.0
    %899 = vmatpush1.msra.mxu0 0.0
    %900 = vmatprep.subr.mxu0 0.0
    %901 = vmatpush1.msra.mxu0 0.0
    %902 = vmatprep.subr.mxu0 0.0
    %903 = vmatpush1.msra.mxu0 0.0
    %904 = vmatprep.subr.mxu0 0.0
    %905 = vmatpush1.msra.mxu0 0.0
    %906 = vmatprep.subr.mxu0 0.0
    %907 = vmatpush1.msra.mxu0 0.0
    %908 = vmatprep.subr.mxu0 0.0
    %909 = vmatpush1.msra.mxu0 0.0
    %910 = vmatprep.mubr.f32.mxu0 0.0
    %911 = vmatmul.mubr.f32.gmra.mrb[0].mxu0 %v841
    %v912 = vpop.f32.mrb[0].mxu0
    %v913 = vadd.f32 %v839, %v912
    %v914 = vpop.f32.mrb[0].mxu0
    %915 = vdwg.mxu0
    %v916 = vmul.f32 %v913, 0.5
    %v917 = vmul.f32 %v913, 0.044715
    %v918 = vmul.f32 %v917, %v913
    %v919 = vmul.f32 %v918, %v913
    %v920 = vadd.f32 %v913, %v919
    %v921 = vmul.f32 %v920, 0.7978846
    %v922 = vtanh.pop %v921
    %v923 = vadd.f32 %v922, 1.0
    %v924 = vmul.f32 %v916, %v923
    %v925 = vld [vmem:[#allocation6 + $0x19] sm:$0xff]
    %v926 = vld [vmem:[#allocation6 + $0x21] sm:$0xf]
    %v927 = vld [vmem:[#allocation6 + $0x25] sm:$0x1]
    %v928 = vlaneseq
    %v929 = vshrl.u32 %v928, 7
    %v930 = vsub.s32 0, %v929
    %v931 = vrot.slane %v927, %v930
    %vm932 = vcmask 97280
    %v934 = vsel %vm932, %v924, 0
    %v937 = vsel %vm108, %v926, 0
    %939 = vmatprep.subr.mxu0 0.0
    %940 = vmatpush1.msra.mxu0 %v925
    %941 = vmatprep.subr.mxu0 0.0
    %942 = vmatpush1.msra.mxu0 %v937
    %943 = vmatprep.subr.mxu0 0.0
    %944 = vmatpush1.msra.mxu0 0.0
    %945 = vmatprep.subr.mxu0 0.0
    %946 = vmatpush1.msra.mxu0 0.0
    %947 = vmatprep.subr.mxu0 0.0
    %948 = vmatpush1.msra.mxu0 0.0
    %949 = vmatprep.subr.mxu0 0.0
    %950 = vmatpush1.msra.mxu0 0.0
    %951 = vmatprep.subr.mxu0 0.0
    %952 = vmatpush1.msra.mxu0 0.0
    %953 = vmatprep.subr.mxu0 0.0
    %954 = vmatpush1.msra.mxu0 0.0
    %955 = vmatprep.subr.mxu0 0.0
    %956 = vmatpush1.msra.mxu0 0.0
    %957 = vmatprep.subr.mxu0 0.0
    %958 = vmatpush1.msra.mxu0 0.0
    %959 = vmatprep.subr.mxu0 0.0
    %960 = vmatpush1.msra.mxu0 0.0
    %961 = vmatprep.subr.mxu0 0.0
    %962 = vmatpush1.msra.mxu0 0.0
    %963 = vmatprep.subr.mxu0 0.0
    %964 = vmatpush1.msra.mxu0 0.0
    %965 = vmatprep.subr.mxu0 0.0
    %966 = vmatpush1.msra.mxu0 0.0
    %967 = vmatprep.subr.mxu0 0.0
    %968 = vmatpush1.msra.mxu0 0.0
    %969 = vmatprep.subr.mxu0 0.0
    %970 = vmatpush1.msra.mxu0 0.0
    %971 = vmatprep.subr.mxu0 0.0
    %972 = vmatpush1.msra.mxu0 0.0
    %973 = vmatprep.subr.mxu0 0.0
    %974 = vmatpush1.msra.mxu0 0.0
    %975 = vmatprep.subr.mxu0 0.0
    %976 = vmatpush1.msra.mxu0 0.0
    %977 = vmatprep.subr.mxu0 0.0
    %978 = vmatpush1.msra.mxu0 0.0
    %979 = vmatprep.subr.mxu0 0.0
    %980 = vmatpush1.msra.mxu0 0.0
    %981 = vmatprep.subr.mxu0 0.0
    %982 = vmatpush1.msra.mxu0 0.0
    %983 = vmatprep.subr.mxu0 0.0
    %984 = vmatpush1.msra.mxu0 0.0
    %985 = vmatprep.subr.mxu0 0.0
    %986 = vmatpush1.msra.mxu0 0.0
    %987 = vmatprep.subr.mxu0 0.0
    %988 = vmatpush1.msra.mxu0 0.0
    %989 = vmatprep.subr.mxu0 0.0
    %990 = vmatpush1.msra.mxu0 0.0
    %991 = vmatprep.subr.mxu0 0.0
    %992 = vmatpush1.msra.mxu0 0.0
    %993 = vmatprep.subr.mxu0 0.0
    %994 = vmatpush1.msra.mxu0 0.0
    %995 = vmatprep.subr.mxu0 0.0
    %996 = vmatpush1.msra.mxu0 0.0
    %997 = vmatprep.subr.mxu0 0.0
    %998 = vmatpush1.msra.mxu0 0.0
    %999 = vmatprep.subr.mxu0 0.0
    %1000 = vmatpush1.msra.mxu0 0.0
    %1001 = vmatprep.subr.mxu0 0.0
    %1002 = vmatpush1.msra.mxu0 0.0
    %1003 = vmatprep.mubr.f32.mxu0 0.0
    %1004 = vmatmul.mubr.f32.gmra.mrb[0].mxu0 %v934
    %v1005 = vpop.f32.mrb[0].mxu0
    %v1006 = vadd.f32 %v931, %v1005
    %v1007 = vpop.f32.mrb[0].mxu0
    %1008 = vdwg.mxu0
    %v1009 = vadd.f32 %v808, %v1006
    %v1010 = vld [vmem:[#allocation6 + $0x26] sm:$0x1]
    %v1011 = vld [vmem:[#allocation6 + $0x27] sm:$0x1]
    %v1012 = vsel %vm118, %v1009, 0.0
    %1013 = vadd.xlane.f32.xlu0 %v1012
    %v1014 = vpop.xlane.xlu0 %1013
    %v1015 = vmul.f32 %v1014, %v122
    %v1016 = vsub.f32 %v1009, %v1015
    %v1017 = vmul.f32 %v1016, %v1016
    %v1018 = vsel %vm118, %v1017, 0.0
    %1019 = vadd.xlane.f32.xlu0 %v1018
    %v1020 = vpop.xlane.xlu0 %1019
    %v1021 = vmul.f32 %v1020, %v122
    %v1022 = vadd.f32 %v1021, 1e-05
    %v1023 = vrsqrt.pop %v1022
    %v1024 = vmul.f32 %v1016, %v1023
    %v1025 = vlaneseq
    %v1026 = vshrl.u32 %v1025, 7
    %v1027 = vsub.s32 0, %v1026
    %v1028 = vrot.slane %v1010, %v1027
    %v1029 = vmul.f32 %v1028, %v1024
    %v1030 = vlaneseq
    %v1031 = vshrl.u32 %v1030, 7
    %v1032 = vsub.s32 0, %v1031
    %v1033 = vrot.slane %v1011, %v1032
    %v1034 = vadd.f32 %v1029, %v1033
    %v1035 = vld [vmem:[#allocation6 + $0x28] sm:$0x7]
    %v1037 = vsel %vm118, %v1034, 0
    %v1040 = vsel %vm106, %v1035, 0
    %1042 = vmatprep.subr.mxu0 0.0
    %1043 = vmatpush1.msra.mxu0 %v1040
    %1044 = vmatprep.subr.mxu0 0.0
    %1045 = vmatpush1.msra.mxu0 0.0
    %1046 = vmatprep.subr.mxu0 0.0
    %1047 = vmatpush1.msra.mxu0 0.0
    %1048 = vmatprep.subr.mxu0 0.0
    %1049 = vmatpush1.msra.mxu0 0.0
    %1050 = vmatprep.subr.mxu0 0.0
    %1051 = vmatpush1.msra.mxu0 0.0
    %1052 = vmatprep.subr.mxu0 0.0
    %1053 = vmatpush1.msra.mxu0 0.0
    %1054 = vmatprep.subr.mxu0 0.0
    %1055 = vmatpush1.msra.mxu0 0.0
    %1056 = vmatprep.subr.mxu0 0.0
    %1057 = vmatpush1.msra.mxu0 0.0
    %1058 = vmatprep.subr.mxu0 0.0
    %1059 = vmatpush1.msra.mxu0 0.0
    %1060 = vmatprep.subr.mxu0 0.0
    %1061 = vmatpush1.msra.mxu0 0.0
    %1062 = vmatprep.subr.mxu0 0.0
    %1063 = vmatpush1.msra.mxu0 0.0
    %1064 = vmatprep.subr.mxu0 0.0
    %1065 = vmatpush1.msra.mxu0 0.0
    %1066 = vmatprep.subr.mxu0 0.0
    %1067 = vmatpush1.msra.mxu0 0.0
    %1068 = vmatprep.subr.mxu0 0.0
    %1069 = vmatpush1.msra.mxu0 0.0
    %1070 = vmatprep.subr.mxu0 0.0
    %1071 = vmatpush1.msra.mxu0 0.0
    %1072 = vmatprep.subr.mxu0 0.0
    %1073 = vmatpush1.msra.mxu0 0.0
    %1074 = vmatprep.subr.mxu0 0.0
    %1075 = vmatpush1.msra.mxu0 0.0
    %1076 = vmatprep.subr.mxu0 0.0
    %1077 = vmatpush1.msra.mxu0 0.0
    %1078 = vmatprep.subr.mxu0 0.0
    %1079 = vmatpush1.msra.mxu0 0.0
    %1080 = vmatprep.subr.mxu0 0.0
    %1081 = vmatpush1.msra.mxu0 0.0
    %1082 = vmatprep.subr.mxu0 0.0
    %1083 = vmatpush1.msra.mxu0 0.0
    %1084 = vmatprep.subr.mxu0 0.0
    %1085 = vmatpush1.msra.mxu0 0.0
    %1086 = vmatprep.subr.mxu0 0.0
    %1087 = vmatpush1.msra.mxu0 0.0
    %1088 = vmatprep.subr.mxu0 0.0
    %1089 = vmatpush1.msra.mxu0 0.0
    %1090 = vmatprep.subr.mxu0 0.0
    %1091 = vmatpush1.msra.mxu0 0.0
    %1092 = vmatprep.subr.mxu0 0.0
    %1093 = vmatpush1.msra.mxu0 0.0
    %1094 = vmatprep.subr.mxu0 0.0
    %1095 = vmatpush1.msra.mxu0 0.0
    %1096 = vmatprep.subr.mxu0 0.0
    %1097 = vmatpush1.msra.mxu0 0.0
    %1098 = vmatprep.subr.mxu0 0.0
    %1099 = vmatpush1.msra.mxu0 0.0
    %1100 = vmatprep.subr.mxu0 0.0
    %1101 = vmatpush1.msra.mxu0 0.0
    %1102 = vmatprep.subr.mxu0 0.0
    %1103 = vmatpush1.msra.mxu0 0.0
    %1104 = vmatprep.subr.mxu0 0.0
    %1105 = vmatpush1.msra.mxu0 0.0
    %1106 = vmatprep.mubr.f32.mxu0 0.0
    %1107 = vmatmul.mubr.f32.gmra.mrb[0].mxu0 %v1037
    %v1108 = vpop.f32.mrb[0].mxu0
    %v1109 = vadd.f32 0.0, %v1108
    %v1110 = vpop.f32.mrb[0].mxu0
    %1111 = vdwg.mxu0
    %1112 = vst [vmem:[#allocation7] sm:$0xff] %v1109
    // Predicated region
    $region18: #{tpu_custom_call.1} parent=1 // pred_check
      _
    $region19: #{tpu_custom_call.1} parent=1 // pred_check_branch
      %1114 = sbr.rel (0) target = $region21
    $region20: #{tpu_custom_call.1} parent=1 // pred_region
      %s1116 = ssub.s32 128, 128
      %1117 = vsyncadd [#allocation4], %s1116
      %s1119 = sshll.u32 [#allocation7], 4
      %s1120 = int_to_ptr.vmem [resolvable:$true] %s1119
      %1122 = dma.vmem_to_hbm [thread:$0]  %s1120, 128, %s2, [#allocation4]
    $region21: #{tpu_custom_call.1} parent=1 // pred_fallthru
      _
    // Predicated region
    $region22: #{tpu_custom_call.1} parent=1 // pred_check
      _
    $region23: #{tpu_custom_call.1} parent=1 // pred_check_branch
      %1124 = sbr.rel (0) target = $region25
    $region24: #{tpu_custom_call.1} parent=1 // pred_region
      %1125 = dma.done [#allocation4], 128
    $region25: #{tpu_custom_call.1} parent=1 // pred_fallthru
      _
    %1126 = vsyncpa [#allocation3], 1
    %1127 = vsyncpa [#allocation4], 1
    %1128 = vsyncpa [#allocation5], 1

</llo_original>
